<compile_context>
chip_gen: v6e
topology: v6e:2x2x1
jax: 0.10.0
libtpu: 0.0.40
codegen_flags: <defaults>
</compile_context>

<pallas_src>
import jax
import jax.numpy as jnp
from jax.experimental import pallas as pl
from jax.experimental.pallas import tpu as pltpu


def _blend_kernel(w_ref, a_ref, b_ref, comb_ref, wts_ref):
    # w_ref:    (1, D)       attention weight vector (f32, resident across grid)
    # a_ref:    (tile_n, D)  tile of A (storage dtype)
    # b_ref:    (tile_n, D)  tile of B (storage dtype)
    # comb_ref: (tile_n, D)  combined output tile (storage dtype)
    # wts_ref:  (2, tile_n)  lane-dense softmax weights (f32)
    w = w_ref[...]                                    # (1, D) f32
    a = a_ref[...].astype(jnp.float32)                # f32 compute (v5e: no bf16 VPU/EUP)
    b = b_ref[...].astype(jnp.float32)

    # Row-wise weighted-sum scores. VPU multiply + XLU reduce; both units have
    # ample slack in this HBM-bound kernel (an MXU dot would be neutral here).
    a_score = jnp.sum(a * w, axis=1, keepdims=True)   # (tile_n, 1)
    b_score = jnp.sum(b * w, axis=1, keepdims=True)   # (tile_n, 1)

    # Numerically stable 2-way softmax (exact divide keeps 1e-5 accuracy).
    m = jnp.maximum(a_score, b_score)
    ea = jnp.exp(a_score - m)
    eb = jnp.exp(b_score - m)
    inv = 1.0 / (ea + eb)
    wa = ea * inv                                     # (tile_n, 1)
    wb = eb * inv                                     # (tile_n, 1)

    comb_ref[...] = (wa * a + wb * b).astype(comb_ref.dtype)

    # Lane-dense weight store: (tile_n, 2) -> (2, tile_n). The XLU transpose is
    # free relative to the HBM bound and turns masked 2-wide stores into
    # unmasked lane-dense stores.
    pair = jnp.concatenate([wa, wb], axis=1)          # (tile_n, 2)
    wts_ref[...] = pair.T                             # (2, tile_n)


def _choose_tile_cap(d, in_itemsize, out_itemsize, vmem_budget_bytes):
    # Per-row VMEM footprint per grid step: double-buffered A & B input tiles,
    # double-buffered combined output tile, plus f32 temporaries (a, b, result).
    per_row = d * (4 * in_itemsize + 2 * out_itemsize + 3 * 4)
    cap = vmem_budget_bytes // max(per_row, 1)
    cap = max(128, (cap // 128) * 128)   # multiple of 128 -> lane-dense wts blocks
    cap = min(cap, 1024)                 # 512-1024 rows ~ HBM roofline sweet spot
    return cap


def blending_forward(A, B, w, *, tile_n=None, vmem_limit_bytes=40 * 1024 * 1024):
    """Pallas forward of Blending.  A, B: [N, D]; w: [D].
    Returns (combined [N, D] in A.dtype, softmax weights [N, 2] f32)."""
    N, D = A.shape
    assert B.shape == (N, D) and w.shape == (D,)
    out_dtype = A.dtype

    if tile_n is None:
        tile_n = _choose_tile_cap(
            D,
            jnp.dtype(A.dtype).itemsize,
            jnp.dtype(out_dtype).itemsize,
            vmem_budget_bytes=24 * 1024 * 1024,   # headroom for v7x's 64 MiB VMEM
        )

    if tile_n >= N:
        # Whole problem in one grid step: full-array blocks are always
        # layout-legal regardless of N/D alignment.
        tile_n = N
        grid = (1,)
    else:
        # When the row axis is actually tiled, tile_n must be 128-aligned so the
        # (tile_n, D) blocks and (2, tile_n) weight blocks are tile-legal. The
        # ragged last block is clipped by Pallas (no explicit padding pass).
        assert tile_n % 128 == 0, "tile_n must be a multiple of 128 when tiling rows"
        grid = (pl.cdiv(N, tile_n),)

    # Only the tiny weight vector is promoted to f32; A/B keep their dtype so
    # bf16 inputs move half the HBM bytes.
    w2d = jnp.asarray(w, dtype=jnp.float32).reshape(1, D)

    combined, weights_t = pl.pallas_call(
        _blend_kernel,
        out_shape=(
            jax.ShapeDtypeStruct((N, D), out_dtype),
            jax.ShapeDtypeStruct((2, N), jnp.float32),
        ),
        grid_spec=pltpu.PrefetchScalarGridSpec(
            num_scalar_prefetch=0,
            grid=grid,
            in_specs=[
                # Constant block index -> w is fetched once and stays resident.
                pl.BlockSpec((1, D), lambda i: (0, 0)),
                pl.BlockSpec((tile_n, D), lambda i: (i, 0)),
                pl.BlockSpec((tile_n, D), lambda i: (i, 0)),
            ],
            out_specs=[
                pl.BlockSpec((tile_n, D), lambda i: (i, 0)),
                pl.BlockSpec((2, tile_n), lambda i: (0, i)),
            ],
        ),
        compiler_params=pltpu.CompilerParams(
            # Independent row tiles: lets v7x shard the grid across both
            # TensorCores; neutral on v5e/v6e.
            dimension_semantics=("parallel",),
            vmem_limit_bytes=vmem_limit_bytes,
        ),
    )(w2d, A, B)

    weights = weights_t.T   # tiny (N, 2) transpose in XLA
    return combined, weights


def _reference(A, B, w):
    Af = A.astype(jnp.float32)
    Bf = B.astype(jnp.float32)
    wf = w.astype(jnp.float32)
    a_score = jnp.sum(Af * wf, axis=1)
    b_score = jnp.sum(Bf * wf, axis=1)
    scores = jnp.stack([a_score, b_score], axis=1)
    wts = jax.nn.softmax(scores, axis=1)
    combined = wts[:, 0:1] * Af + wts[:, 1:2] * Bf
    return combined.astype(A.dtype), wts


if __name__ == "__main__":
    key = jax.random.PRNGKey(0)
    kA, kB, kW = jax.random.split(key, 3)

    # Shapes implied by the module: A, B are [batch, input_dim].
    N, D = 8, 32
    A = jax.random.normal(kA, (N, D), dtype=jnp.float32)
    B = jax.random.normal(kB, (N, D), dtype=jnp.float32)
    w = jax.random.normal(kW, (D,), dtype=jnp.float32)  # nn.init.normal_(mean=0, std=1)

    combined, weights = blending_forward(A, B, w)
    combined, weights = jax.block_until_ready((combined, weights))

    ref_c, ref_w = _reference(A, B, w)
    assert combined.shape == (N, D) and weights.shape == (N, 2)
    assert jnp.allclose(combined, ref_c, atol=1e-5, rtol=1e-5)
    assert jnp.allclose(weights, ref_w, atol=1e-5, rtol=1e-5)

    # Exercise the tiled multi-block path (ragged last block clipped by Pallas,
    # lane-dense weight slabs, multi-step "parallel" grid) at a still-small size.
    N2, D2 = 300, 256
    k2A, k2B, k2W = jax.random.split(kB, 3)
    A2 = jax.random.normal(k2A, (N2, D2), dtype=jnp.float32)
    B2 = jax.random.normal(k2B, (N2, D2), dtype=jnp.float32)
    w2 = jax.random.normal(k2W, (D2,), dtype=jnp.float32)
    c2, wt2 = blending_forward(A2, B2, w2, tile_n=128)
    c2, wt2 = jax.block_until_ready((c2, wt2))
    r2c, r2w = _reference(A2, B2, w2)
    assert c2.shape == (N2, D2) and wt2.shape == (N2, 2)
    assert jnp.allclose(c2, r2c, atol=1e-5, rtol=1e-5)
    assert jnp.allclose(wt2, r2w, atol=1e-5, rtol=1e-5)

    print("KERNEL_OK")
</pallas_src>

<mosaic_0001>
module attributes {stable_mosaic.version = 11 : i64} {
  func.func @_blend_kernel(%arg0: i32, %arg1: memref<1x32xf32, #tpu.memory_space<vmem>>, %arg2: memref<8x32xf32, #tpu.memory_space<vmem>>, %arg3: memref<8x32xf32, #tpu.memory_space<vmem>>, %arg4: memref<8x32xf32, #tpu.memory_space<vmem>>, %arg5: memref<2x8xf32, #tpu.memory_space<vmem>>) attributes {dimension_semantics = [#tpu.dimension_semantics<parallel>], iteration_bounds = array<i64: 1>, scalar_prefetch = 0 : i64, scratch_operands = 0 : i64, tpu.core_type = #tpu.core_type<tc>, window_params = [{pipeline_mode = #tpu.pipeline_mode<synchronous>, transform_indices = @transform_0, window_bounds = array<i64: 1, 32>}, {transform_indices = @transform_1, window_bounds = array<i64: 8, 32>}, {transform_indices = @transform_2, window_bounds = array<i64: 8, 32>}, {transform_indices = @transform_3, window_bounds = array<i64: 8, 32>}, {transform_indices = @transform_4, window_bounds = array<i64: 2, 8>}]} {
    %c0 = arith.constant 0 : index
    %c0_0 = arith.constant 0 : index
    %0 = vector.load %arg1[%c0, %c0_0] : memref<1x32xf32, #tpu.memory_space<vmem>>, vector<1x32xf32>
    %c0_1 = arith.constant 0 : index
    %c0_2 = arith.constant 0 : index
    %1 = vector.load %arg2[%c0_1, %c0_2] : memref<8x32xf32, #tpu.memory_space<vmem>>, vector<8x32xf32>
    %c0_3 = arith.constant 0 : index
    %c0_4 = arith.constant 0 : index
    %2 = vector.load %arg3[%c0_3, %c0_4] : memref<8x32xf32, #tpu.memory_space<vmem>>, vector<8x32xf32>
    %3 = vector.broadcast %0 : vector<1x32xf32> to vector<8x32xf32>
    %4 = arith.mulf %1, %3 : vector<8x32xf32>
    %cst = arith.constant dense<0.000000e+00> : vector<8xf32>
    %5 = vector.multi_reduction <add>, %4, %cst [1] : vector<8x32xf32> to vector<8xf32>
    %6 = vector.shape_cast %5 : vector<8xf32> to vector<8x1xf32>
    %7 = vector.broadcast %0 : vector<1x32xf32> to vector<8x32xf32>
    %8 = arith.mulf %2, %7 : vector<8x32xf32>
    %cst_5 = arith.constant dense<0.000000e+00> : vector<8xf32>
    %9 = vector.multi_reduction <add>, %8, %cst_5 [1] : vector<8x32xf32> to vector<8xf32>
    %10 = vector.shape_cast %9 : vector<8xf32> to vector<8x1xf32>
    %11 = arith.maximumf %6, %10 : vector<8x1xf32>
    %12 = arith.subf %6, %11 : vector<8x1xf32>
    %13 = math.exp %12 : vector<8x1xf32>
    %14 = arith.subf %10, %11 : vector<8x1xf32>
    %15 = math.exp %14 : vector<8x1xf32>
    %16 = arith.addf %13, %15 : vector<8x1xf32>
    %cst_6 = arith.constant 1.000000e+00 : f32
    %17 = vector.broadcast %cst_6 : f32 to vector<8x1xf32>
    %18 = arith.divf %17, %16 : vector<8x1xf32>
    %19 = arith.mulf %13, %18 : vector<8x1xf32>
    %20 = arith.mulf %15, %18 : vector<8x1xf32>
    %21 = vector.broadcast %19 : vector<8x1xf32> to vector<8x32xf32>
    %22 = arith.mulf %21, %1 : vector<8x32xf32>
    %23 = vector.broadcast %20 : vector<8x1xf32> to vector<8x32xf32>
    %24 = arith.mulf %23, %2 : vector<8x32xf32>
    %25 = arith.addf %22, %24 : vector<8x32xf32>
    %c0_7 = arith.constant 0 : index
    %c0_8 = arith.constant 0 : index
    %26 = vector.load %arg4[%c0_7, %c0_8] : memref<8x32xf32, #tpu.memory_space<vmem>>, vector<8x32xf32>
    tpu.vector_store %arg4[%c0_7, %c0_8], %25 {strides = array<i32>} : memref<8x32xf32, #tpu.memory_space<vmem>>, vector<8x32xf32>,
    %27 = tpu.concatenate %19, %20 in 1 : vector<8x1xf32>, vector<8x1xf32> -> vector<8x2xf32>
    %28 = tpu.transpose %27, [1, 0] : vector<8x2xf32> -> vector<2x8xf32>
    %c0_9 = arith.constant 0 : index
    %c0_10 = arith.constant 0 : index
    %29 = vector.load %arg5[%c0_9, %c0_10] : memref<2x8xf32, #tpu.memory_space<vmem>>, vector<2x8xf32>
    tpu.vector_store %arg5[%c0_9, %c0_10], %28 {strides = array<i32>} : memref<2x8xf32, #tpu.memory_space<vmem>>, vector<2x8xf32>,
    return
  }
  func.func @transform_0(%arg0: i32) -> (i32, i32) {
    %c0_i32 = arith.constant 0 : i32
    %c0_i32_0 = arith.constant 0 : i32
    %c0_i32_1 = arith.constant 0 : i32
    return %c0_i32, %c0_i32_0 : i32, i32
  }
  func.func @transform_1(%arg0: i32) -> (i32, i32) {
    %c0_i32 = arith.constant 0 : i32
    %c0_i32_0 = arith.constant 0 : i32
    return %arg0, %c0_i32 : i32, i32
  }
  func.func @transform_2(%arg0: i32) -> (i32, i32) {
    %c0_i32 = arith.constant 0 : i32
    %c0_i32_0 = arith.constant 0 : i32
    return %arg0, %c0_i32 : i32, i32
  }
  func.func @transform_3(%arg0: i32) -> (i32, i32) {
    %c0_i32 = arith.constant 0 : i32
    %c0_i32_0 = arith.constant 0 : i32
    return %arg0, %c0_i32 : i32, i32
  }
  func.func @transform_4(%arg0: i32) -> (i32, i32) {
    %c0_i32 = arith.constant 0 : i32
    %c0_i32_0 = arith.constant 0 : i32
    return %c0_i32, %arg0 : i32, i32
  }
}

</mosaic_0001>

<llo_original>
// kernel: tpu_custom_call.1
$region0: #{tpu_custom_call.1}
  #allocation0 [shape = 'u32[]', space=smem, size = 0x4, offset = 0x4, fixed_abs, tag = 'smem constant byte address 0x4 - core index']
  #allocation1 [shape = 'u32[144,128]{1,0:T(1,128)}', space=vmem, size = 0x12000, scoped, tag = 'internal scratch']
  %s0 = inlined_call_operand.hbm [shape: f32[1,32], index: 0, kind: input, shape index: {}]
  %s1 = inlined_call_operand.hbm [shape: f32[8,32], index: 1, kind: input, shape index: {}]
  %s2 = inlined_call_operand.hbm [shape: f32[8,32], index: 2, kind: input, shape index: {}]
  %s3 = inlined_call_operand.hbm [shape: f32[8,32], index: 3, kind: output, shape index: {0}]
  %s4 = inlined_call_operand.hbm [shape: f32[2,8], index: 4, kind: output, shape index: {1}]
  %5 = xla_tuple %s3, %s4
  %s6 = sld [smem:[#allocation0]]
  $region42: #{tpu_custom_call.1} parent=0
    _
  %s8 = ssub.s32 1, %s6
  %s9 = scalar_select 0, %s8, %s6
  $region1: #{tpu_custom_call.1} parent=0
    #allocation2 [shape = 'u8[512]{0}', space=vmem, size = 0x400, scoped, tag = 'input window, operand 0, single buffered']
    #allocation3 [shape = 's32[1]{0}', space=sflag, size = 0x4, scoped, tag = 'scoped memory for tpu_custom_call.1']
    #allocation4 [shape = 's32[1]{0}', space=sflag, size = 0x4, scoped, tag = 'scoped memory for tpu_custom_call.1']
    #allocation5 [shape = 'u8[4096]{0}', space=vmem, size = 0x1000, scoped, tag = 'input window, operand 1, single buffered']
    #allocation6 [shape = 's32[1]{0}', space=sflag, size = 0x4, scoped, tag = 'scoped memory for tpu_custom_call.1']
    #allocation7 [shape = 'u8[4096]{0}', space=vmem, size = 0x1000, scoped, tag = 'input window, operand 2, single buffered']
    #allocation8 [shape = 'u8[4096]{0}', space=vmem, size = 0x1000, scoped, tag = 'output window, operand 0, single buffered']
    #allocation9 [shape = 'u8[1024]{0}', space=vmem, size = 0x400, scoped, tag = 'output window, operand 1, single buffered']
    #allocation10 [shape = 's32[1]{0}', space=sflag, size = 0x4, scoped, tag = 'scoped memory for tpu_custom_call.1']
    %10 = vsyncpa [#allocation3], 0
    %11 = vsyncpa [#allocation6], 0
    %12 = vsyncpa [#allocation4], 0
    %13 = vsyncpa [#allocation10], 0
    // Predicated region
    $region2: #{tpu_custom_call.1} parent=1 // pred_check
      _
    $region3: #{tpu_custom_call.1} parent=1 // pred_check_branch
      %15 = sbr.rel (0) target = $region5
    $region4: #{tpu_custom_call.1} parent=1 // pred_region
      %s17 = ssub.s32 16, 16
      %18 = vsyncadd [#allocation3], %s17
      %s20 = sshll.u32 [#allocation2], 4
      %s21 = int_to_ptr.vmem [resolvable:$true] %s20
      %23 = dma.hbm_to_vmem [thread:$0]  %s0, 16, %s21, [#allocation3]
    $region5: #{tpu_custom_call.1} parent=1 // pred_fallthru
      _
    // Predicated region
    $region6: #{tpu_custom_call.1} parent=1 // pred_check
      _
    $region7: #{tpu_custom_call.1} parent=1 // pred_check_branch
      %25 = sbr.rel (0) target = $region9
    $region8: #{tpu_custom_call.1} parent=1 // pred_region
      %s27 = ssub.s32 128, 128
      %28 = vsyncadd [#allocation6], %s27
      %s30 = sshll.u32 [#allocation5], 4
      %s31 = int_to_ptr.vmem [resolvable:$true] %s30
      %33 = dma.hbm_to_vmem [thread:$0]  %s1, 128, %s31, [#allocation6]
    $region9: #{tpu_custom_call.1} parent=1 // pred_fallthru
      _
    // Predicated region
    $region10: #{tpu_custom_call.1} parent=1 // pred_check
      _
    $region11: #{tpu_custom_call.1} parent=1 // pred_check_branch
      %35 = sbr.rel (0) target = $region13
    $region12: #{tpu_custom_call.1} parent=1 // pred_region
      %s37 = ssub.s32 128, 128
      %38 = vsyncadd [#allocation6], %s37
      %s40 = sshll.u32 [#allocation7], 4
      %s41 = int_to_ptr.vmem [resolvable:$true] %s40
      %43 = dma.hbm_to_vmem [thread:$0]  %s2, 128, %s41, [#allocation6]
    $region13: #{tpu_custom_call.1} parent=1 // pred_fallthru
      _
    // Predicated region
    $region14: #{tpu_custom_call.1} parent=1 // pred_check
      _
    $region15: #{tpu_custom_call.1} parent=1 // pred_check_branch
      %45 = sbr.rel (0) target = $region17
    $region16: #{tpu_custom_call.1} parent=1 // pred_region
      %46 = dma.done [#allocation3], 16
    $region17: #{tpu_custom_call.1} parent=1 // pred_fallthru
      _
    // Predicated region
    $region18: #{tpu_custom_call.1} parent=1 // pred_check
      _
    $region19: #{tpu_custom_call.1} parent=1 // pred_check_branch
      %48 = sbr.rel (0) target = $region21
    $region20: #{tpu_custom_call.1} parent=1 // pred_region
      %49 = dma.done [#allocation6], 128
    $region21: #{tpu_custom_call.1} parent=1 // pred_fallthru
      _
    // Predicated region
    $region22: #{tpu_custom_call.1} parent=1 // pred_check
      _
    $region23: #{tpu_custom_call.1} parent=1 // pred_check_branch
      %51 = sbr.rel (0) target = $region25
    $region24: #{tpu_custom_call.1} parent=1 // pred_region
      %52 = dma.done [#allocation6], 128
    $region25: #{tpu_custom_call.1} parent=1 // pred_fallthru
      _
    %v53 = vld [vmem:[#allocation2] sm:$0x1]
    %v54 = vld [vmem:[#allocation5] sm:$0xff]
    %v55 = vld [vmem:[#allocation7] sm:$0xff]
    %v57 = vlaneseq
    %v58 = vshrl.u32 %v57, 7
    %v59 = vsub.s32 0, %v58
    %v60 = vrot.slane %v53, %v59
    %v62 = vmul.f32 %v54, %v60
    %vm63 = vcmask 261120
    %v64 = vsel %vm63, %v62, 0.0
    %65 = vadd.xlane.f32.xlu0 %v64
    %v66 = vpop.xlane.xlu0 %65
    %v67 = vmul.f32 %v55, %v60
    %v68 = vsel %vm63, %v67, 0.0
    %69 = vadd.xlane.f32.xlu0 %v68
    %v70 = vpop.xlane.xlu0 %69
    %v71 = vmax.f32 %v66, %v70
    %v72 = vsub.f32 %v66, %v71
    %v73 = vmul.f32 %v72, 1.442695
    %v74 = vpow.pop %v73
    %v75 = vsub.f32 %v70, %v71
    %v76 = vmul.f32 %v75, 1.442695
    %v77 = vpow.pop %v76
    %v78 = vadd.f32 %v74, %v77
    %v79 = vrcp.pop %v78
    %v80 = vmul.f32 1.0, %v79
    %v81 = vmul.f32 %v74, %v80
    %v82 = vmul.f32 %v77, %v80
    %v83 = vmul.f32 %v81, %v54
    %v84 = vmul.f32 %v82, %v55
    %v85 = vadd.f32 %v83, %v84
    %86 = vst.msk [vmem:[#allocation8] sm:$0xff] %vm63, %v85
    %vm87 = vcmask 7168
    %v88 = vsel %vm87, %v81, %v82
    %89 = vxpose.xlu0.b32.start [1/16] %v88, 128
    %90 = vxpose.xlu0.b32.cont [2/16] 0.0, 128
    %91 = vxpose.xlu0.b32.cont [3/16] 0.0, 128
    %92 = vxpose.xlu0.b32.cont [4/16] 0.0, 128
    %93 = vxpose.xlu0.b32.cont [5/16] 0.0, 128
    %94 = vxpose.xlu0.b32.cont [6/16] 0.0, 128
    %95 = vxpose.xlu0.b32.cont [7/16] 0.0, 128
    %96 = vxpose.xlu0.b32.cont [8/16] 0.0, 128
    %97 = vxpose.xlu0.b32.cont [9/16] 0.0, 128
    %98 = vxpose.xlu0.b32.cont [10/16] 0.0, 128
    %99 = vxpose.xlu0.b32.cont [11/16] 0.0, 128
    %100 = vxpose.xlu0.b32.cont [12/16] 0.0, 128
    %101 = vxpose.xlu0.b32.cont [13/16] 0.0, 128
    %102 = vxpose.xlu0.b32.cont [14/16] 0.0, 128
    %103 = vxpose.xlu0.b32.cont [15/16] 0.0, 128
    %104 = vxpose.xlu0.b32.end [16/16] 0.0, 128
    %v105 = vpop.trf.xlu0
    %v106 = vpop.trf.xlu0
    %v107 = vpop.trf.xlu0
    %v108 = vpop.trf.xlu0
    %v109 = vpop.trf.xlu0
    %v110 = vpop.trf.xlu0
    %v111 = vpop.trf.xlu0
    %v112 = vpop.trf.xlu0
    %v113 = vpop.trf.xlu0
    %v114 = vpop.trf.xlu0
    %v115 = vpop.trf.xlu0
    %v116 = vpop.trf.xlu0
    %v117 = vpop.trf.xlu0
    %v118 = vpop.trf.xlu0
    %v119 = vpop.trf.xlu0
    %v120 = vpop.trf.xlu0
    %vm121 = vcmask 58368
    %122 = vst.msk [vmem:[#allocation9] sm:$0x3] %vm121, %v105
    // Predicated region
    $region26: #{tpu_custom_call.1} parent=1 // pred_check
      _
    $region27: #{tpu_custom_call.1} parent=1 // pred_check_branch
      %124 = sbr.rel (0) target = $region29
    $region28: #{tpu_custom_call.1} parent=1 // pred_region
      %s126 = ssub.s32 128, 128
      %127 = vsyncadd [#allocation4], %s126
      %s129 = sshll.u32 [#allocation8], 4
      %s130 = int_to_ptr.vmem [resolvable:$true] %s129
      %132 = dma.vmem_to_hbm [thread:$0]  %s130, 128, %s3, [#allocation4]
    $region29: #{tpu_custom_call.1} parent=1 // pred_fallthru
      _
    // Predicated region
    $region30: #{tpu_custom_call.1} parent=1 // pred_check
      _
    $region31: #{tpu_custom_call.1} parent=1 // pred_check_branch
      %134 = sbr.rel (0) target = $region33
    $region32: #{tpu_custom_call.1} parent=1 // pred_region
      %s136 = ssub.s32 32, 32
      %137 = vsyncadd [#allocation10], %s136
      %s139 = sshll.u32 [#allocation9], 4
      %s140 = int_to_ptr.vmem [resolvable:$true] %s139
      %142 = dma.vmem_to_hbm [thread:$0]  %s140, 32, %s4, [#allocation10]
    $region33: #{tpu_custom_call.1} parent=1 // pred_fallthru
      _
    // Predicated region
    $region34: #{tpu_custom_call.1} parent=1 // pred_check
      _
    $region35: #{tpu_custom_call.1} parent=1 // pred_check_branch
      %144 = sbr.rel (0) target = $region37
    $region36: #{tpu_custom_call.1} parent=1 // pred_region
      %145 = dma.done [#allocation4], 128
    $region37: #{tpu_custom_call.1} parent=1 // pred_fallthru
      _
    // Predicated region
    $region38: #{tpu_custom_call.1} parent=1 // pred_check
      _
    $region39: #{tpu_custom_call.1} parent=1 // pred_check_branch
      %147 = sbr.rel (0) target = $region41
    $region40: #{tpu_custom_call.1} parent=1 // pred_region
      %148 = dma.done [#allocation10], 32
    $region41: #{tpu_custom_call.1} parent=1 // pred_fallthru
      _
    %149 = vsyncpa [#allocation3], 1
    %150 = vsyncpa [#allocation6], 1
    %151 = vsyncpa [#allocation4], 1
    %152 = vsyncpa [#allocation10], 1

</llo_original>
